<compile_context>
chip_gen: v7x
topology: tpu7x:2x2x1
jax: 0.10.0
libtpu: 0.0.40
codegen_flags: <defaults>
</compile_context>

<pallas_src>
import math

import jax
import jax.numpy as jnp
from jax.experimental import pallas as pl
from jax.experimental.pallas import tpu as pltpu


# --------------------------------------------------------------------------
# Kernels
# --------------------------------------------------------------------------
def _logeig_flat_kernel(s_ref, u_ref, o_ref, logm_scr):
    """log(X) = U diag(log s) U^T, written row-major flattened (lane dense).

    s_ref:    (TB, N)     eigenvalues
    u_ref:    (TB, N, N)  eigenvectors
    o_ref:    (TB, N*N)   flattened matrix logarithm
    logm_scr: (TB, N, N)  f32 VMEM scratch
    """
    n = u_ref.shape[-1]
    # Clamp: near-singular SPD inputs must not produce -inf/NaN (exact no-op
    # for genuinely positive eigenvalues).
    s = jnp.maximum(s_ref[...], jnp.finfo(s_ref.dtype).tiny)
    log_s = jnp.log(s)                               # EUP transcendental
    u = u_ref[...]
    scaled = u * log_s[:, None, :]                   # U @ diag(log s)  (VPU)
    # logm[b,i,k] = sum_j scaled[b,i,j] * u[b,k,j]  -> contraction over the
    # last dims of BOTH operands, so no explicit transpose of U is needed.
    logm_scr[...] = jnp.einsum(
        "bij,bkj->bik", scaled, u, preferred_element_type=jnp.float32
    )
    # Row-major flatten into the lane-dense output block (static slices,
    # memory-based so it lowers unconditionally).
    for i in range(n):
        o_ref[:, i * n:(i + 1) * n] = logm_scr[:, i, :].astype(o_ref.dtype)


def _logeig_tril_kernel(s_ref, u_ref, sel_ref, o_ref, logm_scr, flat_scr):
    """Same reconstruction, with the tril embedding fused via a selection matmul.

    sel_ref:  (N*N, W)  one-hot selection matrix with sqrt(2) scaling folded in
                        (W = N*(N+1)/2); grid-invariant input (not re-DMAed).
    o_ref:    (TB, W)
    logm_scr: (TB, N, N) f32 scratch, flat_scr: (TB, N*N) f32 scratch
    """
    n = u_ref.shape[-1]
    s = jnp.maximum(s_ref[...], jnp.finfo(s_ref.dtype).tiny)
    log_s = jnp.log(s)
    u = u_ref[...]
    scaled = u * log_s[:, None, :]
    logm_scr[...] = jnp.einsum(
        "bij,bkj->bik", scaled, u, preferred_element_type=jnp.float32
    )
    for i in range(n):
        flat_scr[:, i * n:(i + 1) * n] = logm_scr[:, i, :]
    # Gather + sqrt(2) scale as a single MXU matmul (one-hot columns).
    out = jnp.dot(flat_scr[...], sel_ref[...], preferred_element_type=jnp.float32)
    o_ref[...] = out.astype(o_ref.dtype)


# --------------------------------------------------------------------------
# Wrapper
# --------------------------------------------------------------------------
def _pick_batch_tile(batch, n, out_w, fused_tril):
    """Largest batch tile that fits a modest (double-buffered) VMEM budget."""
    bytes_per_b = 4 * (n + n * n + out_w) * 2        # s + U + out, double buffered
    bytes_per_b += 4 * n * n                         # logm scratch
    if fused_tril:
        bytes_per_b += 4 * n * n                     # flat scratch
    tb = max(8, (8 << 20) // max(bytes_per_b, 1))
    tb = min(tb, 256)
    if batch >= 16:
        # Keep >= 2 grid steps so the pipeline overlaps DMA with compute and
        # both v7x TensorCores get work.
        tb = min(tb, -(-batch // 2))
    tb = max(8, (tb // 8) * 8)                       # (8,128) second-minor rule
    if batch <= tb:
        return batch                                 # single block == full dims
    return tb


def _sym_logm_embed_pallas(s, u, sel=None):
    """s: (B, N), u: (B, N, N) -> flattened logm (B, N*N), or the fused tril
    embedding (B, N*(N+1)/2) when a selection matrix `sel` is provided."""
    b, n = s.shape
    fused = sel is not None
    out_w = sel.shape[1] if fused else n * n
    tb = _pick_batch_tile(b, n, out_w, fused)
    grid = (pl.cdiv(b, tb),)

    in_specs = [
        pl.BlockSpec((tb, n), lambda i: (i, 0)),
        pl.BlockSpec((tb, n, n), lambda i: (i, 0, 0)),
    ]
    scratch_shapes = [pltpu.VMEM((tb, n, n), jnp.float32)]
    if fused:
        in_specs.append(pl.BlockSpec(sel.shape, lambda i: (0, 0)))
        scratch_shapes.append(pltpu.VMEM((tb, n * n), jnp.float32))
        kernel = _logeig_tril_kernel
        args = (s, u, sel)
    else:
        kernel = _logeig_flat_kernel
        args = (s, u)

    # Explicit VMEM budget for the chosen tile (+ headroom); stays well inside
    # every generation's limit (v7x physical VMEM is only 64 MiB).
    tile_bytes = 2 * 4 * tb * (n + n * n + out_w) + 4 * tb * n * n
    if fused:
        tile_bytes += 4 * tb * n * n + 2 * 4 * sel.size
    vmem_limit = int(min(48 << 20, max(16 << 20, 4 * tile_bytes)))

    flops = 2 * b * n ** 3 + b * n * n
    bytes_accessed = 4 * b * (n + n * n + out_w)
    if fused:
        flops += 2 * b * n * n * out_w
        bytes_accessed += 4 * int(sel.size)

    return pl.pallas_call(
        kernel,
        out_shape=jax.ShapeDtypeStruct((b, out_w), u.dtype),
        grid=grid,
        in_specs=in_specs,
        out_specs=pl.BlockSpec((tb, out_w), lambda i: (i, 0)),
        scratch_shapes=scratch_shapes,
        compiler_params=pltpu.CompilerParams(
            dimension_semantics=("parallel",),
            vmem_limit_bytes=vmem_limit,
        ),
        cost_estimate=pl.CostEstimate(
            flops=int(flops),
            transcendentals=int(b * n),
            bytes_accessed=int(bytes_accessed),
        ),
    )(*args)


class LogEig:
    """JAX/Pallas re-implementation of spdnets.modules.LogEig.

    tril=False (SPDNet): output (B, prod(lead[1:])*ndim*ndim), row-major
                         flattened logm (torch .flatten(start_dim=1)).
    tril=True  (TSMNet): output (..., ndim*(ndim+1)/2): diagonal entries
                         followed by sqrt(2)-scaled strict lower-triangular
                         entries (same ordering as torch.tril_indices).
    """

    # Above this size the one-hot selection matrix for the fused tril
    # embedding stops being worth keeping in VMEM; fall back to an XLA gather.
    _FUSE_TRIL_MAX_BYTES = 4 << 20

    def __init__(self, ndim, tril=False):
        self.ndim = ndim
        self.tril = tril
        if tril:
            rows, cols = jnp.tril_indices(ndim, k=-1)
            diag = jnp.arange(ndim, dtype=jnp.int32)
            ix_r = jnp.concatenate([diag, rows.astype(jnp.int32)])
            ix_c = jnp.concatenate([diag, cols.astype(jnp.int32)])
            w = ndim * (ndim + 1) // 2
            scale = jnp.concatenate(
                [jnp.ones((ndim,), jnp.float32),
                 jnp.full((ndim * (ndim - 1) // 2,), math.sqrt(2.0), jnp.float32)]
            )
            self.flat_idx = ix_r * ndim + ix_c          # into row-major flatten
            self.scale = scale
            if 4 * ndim * ndim * w <= self._FUSE_TRIL_MAX_BYTES:
                # One-hot selection matrix with the sqrt(2) scale folded in:
                #   (flat logm) @ sel == [diag, sqrt(2) * strict_lower]
                self.sel = (
                    jnp.zeros((ndim * ndim, w), jnp.float32)
                    .at[self.flat_idx, jnp.arange(w)]
                    .set(scale)
                )
            else:
                # TODO(synk): for large ndim the tril gather stays in XLA
                # (fusing it would need an in-kernel gather / DMA scatter).
                self.sel = None

    def __call__(self, X):
        n = self.ndim
        assert X.ndim >= 3 and X.shape[-1] == n and X.shape[-2] == n
        lead = X.shape[:-2]
        b = 1
        for d in lead:
            b *= d
        # Symmetric eigendecomposition stays in plain JAX (see TODO above).
        s, u = jnp.linalg.eigh(X)
        s = s.reshape(b, n)
        u = u.reshape(b, n, n)
        if self.tril:
            if self.sel is not None:
                emb = _sym_logm_embed_pallas(s, u, self.sel)
            else:
                flat = _sym_logm_embed_pallas(s, u)              # (b, N*N)
                emb = flat[:, self.flat_idx] * self.scale.astype(flat.dtype)
            return emb.reshape(*lead, emb.shape[-1])
        flat = _sym_logm_embed_pallas(s, u)                      # (b, N*N)
        # torch: X.flatten(start_dim=1); contiguous reshape -> free in XLA.
        return flat.reshape(X.shape[0], -1)


if __name__ == "__main__":
    key = jax.random.PRNGKey(0)
    B, N = 2, 16
    A = jax.random.normal(key, (B, N, N), dtype=jnp.float32)
    # Deterministic SPD inputs: A A^T + N*I
    X = A @ jnp.swapaxes(A, -1, -2) + N * jnp.eye(N, dtype=jnp.float32)

    # Pure-JAX reference reconstruction (sanity check).
    evals, evecs = jnp.linalg.eigh(X)
    logm_ref = (evecs * jnp.log(evals)[:, None, :]) @ jnp.swapaxes(evecs, -1, -2)

    # tril=False (SPDNet convention)
    out_flat = LogEig(ndim=N, tril=False)(X)
    jax.block_until_ready(out_flat)
    assert out_flat.shape == (B, N * N), out_flat.shape
    assert jnp.max(jnp.abs(out_flat - logm_ref.reshape(B, N * N))) < 1e-3

    # tril=True (TSMNet convention)
    out_tril = LogEig(ndim=N, tril=True)(X)
    jax.block_until_ready(out_tril)
    W = N * (N + 1) // 2
    assert out_tril.shape == (B, W), out_tril.shape
    rows, cols = jnp.tril_indices(N, k=-1)
    diag = jnp.arange(N)
    ixr = jnp.concatenate([diag, rows])
    ixc = jnp.concatenate([diag, cols])
    ref_scale = jnp.concatenate(
        [jnp.ones((N,)), jnp.full((N * (N - 1) // 2,), math.sqrt(2.0))]
    )
    ref_tril = logm_ref[:, ixr, ixc] * ref_scale
    assert jnp.max(jnp.abs(out_tril - ref_tril)) < 1e-3

    # Larger batch: exercises a multi-step grid (batch tiling / pipelining).
    B2 = 48
    A2 = jax.random.normal(jax.random.PRNGKey(0), (B2, N, N), dtype=jnp.float32)
    X2 = A2 @ jnp.swapaxes(A2, -1, -2) + N * jnp.eye(N, dtype=jnp.float32)
    ev2, U2 = jnp.linalg.eigh(X2)
    ref2 = ((U2 * jnp.log(ev2)[:, None, :]) @ jnp.swapaxes(U2, -1, -2)).reshape(B2, -1)
    out2 = LogEig(ndim=N, tril=False)(X2)
    jax.block_until_ready(out2)
    assert out2.shape == (B2, N * N), out2.shape
    assert jnp.max(jnp.abs(out2 - ref2)) < 1e-3

    print("KERNEL_OK")
</pallas_src>

<mosaic_0001>
module attributes {stable_mosaic.version = 11 : i64} {
  func.func @_logeig_flat_kernel(%arg0: i32, %arg1: memref<2x16xf32, #tpu.memory_space<vmem>>, %arg2: memref<2x16x16xf32, #tpu.memory_space<vmem>>, %arg3: memref<2x256xf32, #tpu.memory_space<vmem>>, %arg4: memref<2x16x16xf32, #tpu.memory_space<vmem>>) attributes {dimension_semantics = [#tpu.dimension_semantics<parallel>], iteration_bounds = array<i64: 1>, scalar_prefetch = 0 : i64, scratch_operands = 1 : i64, tpu.core_type = #tpu.core_type<tc>, window_params = [{transform_indices = @transform_0, window_bounds = array<i64: 2, 16>}, {transform_indices = @transform_1, window_bounds = array<i64: 2, 16, 16>}, {transform_indices = @transform_2, window_bounds = array<i64: 2, 256>}]} {
    %c0 = arith.constant 0 : index
    %c0_0 = arith.constant 0 : index
    %0 = vector.load %arg1[%c0, %c0_0] : memref<2x16xf32, #tpu.memory_space<vmem>>, vector<2x16xf32>
    %cst = arith.constant 1.17549435E-38 : f32
    %1 = vector.broadcast %cst : f32 to vector<2x16xf32>
    %2 = arith.maximumf %0, %1 : vector<2x16xf32>
    %3 = math.log %2 : vector<2x16xf32>
    %c0_1 = arith.constant 0 : index
    %c0_2 = arith.constant 0 : index
    %c0_3 = arith.constant 0 : index
    %4 = vector.load %arg2[%c0_1, %c0_2, %c0_3] : memref<2x16x16xf32, #tpu.memory_space<vmem>>, vector<2x16x16xf32>
    %5 = vector.shape_cast %3 : vector<2x16xf32> to vector<2x1x16xf32>
    %6 = vector.broadcast %5 : vector<2x1x16xf32> to vector<2x16x16xf32>
    %7 = arith.mulf %4, %6 : vector<2x16x16xf32>
    "tpu.trace_start"() <{level = 10 : i32, message = "bij,bkj->bik"}> : () -> ()
    %cst_4 = arith.constant dense<0.000000e+00> : vector<2x16x16xf32>
    %8 = tpu.matmul %7, %4, %cst_4 {dimension_numbers = #tpu.dot_dimension_numbers<[2], [2], [1], [1], [0, 0, 0, 1, 1, 1], [0], [0]>} : vector<2x16x16xf32>, vector<2x16x16xf32>, vector<2x16x16xf32> -> vector<2x16x16xf32>
    "tpu.trace_stop"() : () -> ()
    %c0_5 = arith.constant 0 : index
    %c0_6 = arith.constant 0 : index
    %c0_7 = arith.constant 0 : index
    %9 = vector.load %arg4[%c0_5, %c0_6, %c0_7] : memref<2x16x16xf32, #tpu.memory_space<vmem>>, vector<2x16x16xf32>
    tpu.vector_store %arg4[%c0_5, %c0_6, %c0_7], %8 {strides = array<i32>} : memref<2x16x16xf32, #tpu.memory_space<vmem>>, vector<2x16x16xf32>,
    %c0_8 = arith.constant 0 : index
    %c0_9 = arith.constant 0 : index
    %c0_10 = arith.constant 0 : index
    %10 = vector.load %arg4[%c0_8, %c0_9, %c0_10] : memref<2x16x16xf32, #tpu.memory_space<vmem>>, vector<2x1x16xf32>
    %11 = vector.shape_cast %10 : vector<2x1x16xf32> to vector<2x16xf32>
    %c0_11 = arith.constant 0 : index
    %c0_12 = arith.constant 0 : index
    %12 = vector.load %arg3[%c0_11, %c0_12] : memref<2x256xf32, #tpu.memory_space<vmem>>, vector<2x16xf32>
    tpu.vector_store %arg3[%c0_11, %c0_12], %11 {strides = array<i32>} : memref<2x256xf32, #tpu.memory_space<vmem>>, vector<2x16xf32>,
    %c0_13 = arith.constant 0 : index
    %c1 = arith.constant 1 : index
    %c0_14 = arith.constant 0 : index
    %13 = vector.load %arg4[%c0_13, %c1, %c0_14] : memref<2x16x16xf32, #tpu.memory_space<vmem>>, vector<2x1x16xf32>
    %14 = vector.shape_cast %13 : vector<2x1x16xf32> to vector<2x16xf32>
    %c0_15 = arith.constant 0 : index
    %c16 = arith.constant 16 : index
    %15 = vector.load %arg3[%c0_15, %c16] : memref<2x256xf32, #tpu.memory_space<vmem>>, vector<2x16xf32>
    tpu.vector_store %arg3[%c0_15, %c16], %14 {strides = array<i32>} : memref<2x256xf32, #tpu.memory_space<vmem>>, vector<2x16xf32>,
    %c0_16 = arith.constant 0 : index
    %c2 = arith.constant 2 : index
    %c0_17 = arith.constant 0 : index
    %16 = vector.load %arg4[%c0_16, %c2, %c0_17] : memref<2x16x16xf32, #tpu.memory_space<vmem>>, vector<2x1x16xf32>
    %17 = vector.shape_cast %16 : vector<2x1x16xf32> to vector<2x16xf32>
    %c0_18 = arith.constant 0 : index
    %c32 = arith.constant 32 : index
    %18 = vector.load %arg3[%c0_18, %c32] : memref<2x256xf32, #tpu.memory_space<vmem>>, vector<2x16xf32>
    tpu.vector_store %arg3[%c0_18, %c32], %17 {strides = array<i32>} : memref<2x256xf32, #tpu.memory_space<vmem>>, vector<2x16xf32>,
    %c0_19 = arith.constant 0 : index
    %c3 = arith.constant 3 : index
    %c0_20 = arith.constant 0 : index
    %19 = vector.load %arg4[%c0_19, %c3, %c0_20] : memref<2x16x16xf32, #tpu.memory_space<vmem>>, vector<2x1x16xf32>
    %20 = vector.shape_cast %19 : vector<2x1x16xf32> to vector<2x16xf32>
    %c0_21 = arith.constant 0 : index
    %c48 = arith.constant 48 : index
    %21 = vector.load %arg3[%c0_21, %c48] : memref<2x256xf32, #tpu.memory_space<vmem>>, vector<2x16xf32>
    tpu.vector_store %arg3[%c0_21, %c48], %20 {strides = array<i32>} : memref<2x256xf32, #tpu.memory_space<vmem>>, vector<2x16xf32>,
    %c0_22 = arith.constant 0 : index
    %c4 = arith.constant 4 : index
    %c0_23 = arith.constant 0 : index
    %22 = vector.load %arg4[%c0_22, %c4, %c0_23] : memref<2x16x16xf32, #tpu.memory_space<vmem>>, vector<2x1x16xf32>
    %23 = vector.shape_cast %22 : vector<2x1x16xf32> to vector<2x16xf32>
    %c0_24 = arith.constant 0 : index
    %c64 = arith.constant 64 : index
    %24 = vector.load %arg3[%c0_24, %c64] : memref<2x256xf32, #tpu.memory_space<vmem>>, vector<2x16xf32>
    tpu.vector_store %arg3[%c0_24, %c64], %23 {strides = array<i32>} : memref<2x256xf32, #tpu.memory_space<vmem>>, vector<2x16xf32>,
    %c0_25 = arith.constant 0 : index
    %c5 = arith.constant 5 : index
    %c0_26 = arith.constant 0 : index
    %25 = vector.load %arg4[%c0_25, %c5, %c0_26] : memref<2x16x16xf32, #tpu.memory_space<vmem>>, vector<2x1x16xf32>
    %26 = vector.shape_cast %25 : vector<2x1x16xf32> to vector<2x16xf32>
    %c0_27 = arith.constant 0 : index
    %c80 = arith.constant 80 : index
    %27 = vector.load %arg3[%c0_27, %c80] : memref<2x256xf32, #tpu.memory_space<vmem>>, vector<2x16xf32>
    tpu.vector_store %arg3[%c0_27, %c80], %26 {strides = array<i32>} : memref<2x256xf32, #tpu.memory_space<vmem>>, vector<2x16xf32>,
    %c0_28 = arith.constant 0 : index
    %c6 = arith.constant 6 : index
    %c0_29 = arith.constant 0 : index
    %28 = vector.load %arg4[%c0_28, %c6, %c0_29] : memref<2x16x16xf32, #tpu.memory_space<vmem>>, vector<2x1x16xf32>
    %29 = vector.shape_cast %28 : vector<2x1x16xf32> to vector<2x16xf32>
    %c0_30 = arith.constant 0 : index
    %c96 = arith.constant 96 : index
    %30 = vector.load %arg3[%c0_30, %c96] : memref<2x256xf32, #tpu.memory_space<vmem>>, vector<2x16xf32>
    tpu.vector_store %arg3[%c0_30, %c96], %29 {strides = array<i32>} : memref<2x256xf32, #tpu.memory_space<vmem>>, vector<2x16xf32>,
    %c0_31 = arith.constant 0 : index
    %c7 = arith.constant 7 : index
    %c0_32 = arith.constant 0 : index
    %31 = vector.load %arg4[%c0_31, %c7, %c0_32] : memref<2x16x16xf32, #tpu.memory_space<vmem>>, vector<2x1x16xf32>
    %32 = vector.shape_cast %31 : vector<2x1x16xf32> to vector<2x16xf32>
    %c0_33 = arith.constant 0 : index
    %c112 = arith.constant 112 : index
    %33 = vector.load %arg3[%c0_33, %c112] : memref<2x256xf32, #tpu.memory_space<vmem>>, vector<2x16xf32>
    tpu.vector_store %arg3[%c0_33, %c112], %32 {strides = array<i32>} : memref<2x256xf32, #tpu.memory_space<vmem>>, vector<2x16xf32>,
    %c0_34 = arith.constant 0 : index
    %c8 = arith.constant 8 : index
    %c0_35 = arith.constant 0 : index
    %34 = vector.load %arg4[%c0_34, %c8, %c0_35] : memref<2x16x16xf32, #tpu.memory_space<vmem>>, vector<2x1x16xf32>
    %35 = vector.shape_cast %34 : vector<2x1x16xf32> to vector<2x16xf32>
    %c0_36 = arith.constant 0 : index
    %c128 = arith.constant 128 : index
    %36 = vector.load %arg3[%c0_36, %c128] : memref<2x256xf32, #tpu.memory_space<vmem>>, vector<2x16xf32>
    tpu.vector_store %arg3[%c0_36, %c128], %35 {strides = array<i32>} : memref<2x256xf32, #tpu.memory_space<vmem>>, vector<2x16xf32>,
    %c0_37 = arith.constant 0 : index
    %c9 = arith.constant 9 : index
    %c0_38 = arith.constant 0 : index
    %37 = vector.load %arg4[%c0_37, %c9, %c0_38] : memref<2x16x16xf32, #tpu.memory_space<vmem>>, vector<2x1x16xf32>
    %38 = vector.shape_cast %37 : vector<2x1x16xf32> to vector<2x16xf32>
    %c0_39 = arith.constant 0 : index
    %c144 = arith.constant 144 : index
    %39 = vector.load %arg3[%c0_39, %c144] : memref<2x256xf32, #tpu.memory_space<vmem>>, vector<2x16xf32>
    tpu.vector_store %arg3[%c0_39, %c144], %38 {strides = array<i32>} : memref<2x256xf32, #tpu.memory_space<vmem>>, vector<2x16xf32>,
    %c0_40 = arith.constant 0 : index
    %c10 = arith.constant 10 : index
    %c0_41 = arith.constant 0 : index
    %40 = vector.load %arg4[%c0_40, %c10, %c0_41] : memref<2x16x16xf32, #tpu.memory_space<vmem>>, vector<2x1x16xf32>
    %41 = vector.shape_cast %40 : vector<2x1x16xf32> to vector<2x16xf32>
    %c0_42 = arith.constant 0 : index
    %c160 = arith.constant 160 : index
    %42 = vector.load %arg3[%c0_42, %c160] : memref<2x256xf32, #tpu.memory_space<vmem>>, vector<2x16xf32>
    tpu.vector_store %arg3[%c0_42, %c160], %41 {strides = array<i32>} : memref<2x256xf32, #tpu.memory_space<vmem>>, vector<2x16xf32>,
    %c0_43 = arith.constant 0 : index
    %c11 = arith.constant 11 : index
    %c0_44 = arith.constant 0 : index
    %43 = vector.load %arg4[%c0_43, %c11, %c0_44] : memref<2x16x16xf32, #tpu.memory_space<vmem>>, vector<2x1x16xf32>
    %44 = vector.shape_cast %43 : vector<2x1x16xf32> to vector<2x16xf32>
    %c0_45 = arith.constant 0 : index
    %c176 = arith.constant 176 : index
    %45 = vector.load %arg3[%c0_45, %c176] : memref<2x256xf32, #tpu.memory_space<vmem>>, vector<2x16xf32>
    tpu.vector_store %arg3[%c0_45, %c176], %44 {strides = array<i32>} : memref<2x256xf32, #tpu.memory_space<vmem>>, vector<2x16xf32>,
    %c0_46 = arith.constant 0 : index
    %c12 = arith.constant 12 : index
    %c0_47 = arith.constant 0 : index
    %46 = vector.load %arg4[%c0_46, %c12, %c0_47] : memref<2x16x16xf32, #tpu.memory_space<vmem>>, vector<2x1x16xf32>
    %47 = vector.shape_cast %46 : vector<2x1x16xf32> to vector<2x16xf32>
    %c0_48 = arith.constant 0 : index
    %c192 = arith.constant 192 : index
    %48 = vector.load %arg3[%c0_48, %c192] : memref<2x256xf32, #tpu.memory_space<vmem>>, vector<2x16xf32>
    tpu.vector_store %arg3[%c0_48, %c192], %47 {strides = array<i32>} : memref<2x256xf32, #tpu.memory_space<vmem>>, vector<2x16xf32>,
    %c0_49 = arith.constant 0 : index
    %c13 = arith.constant 13 : index
    %c0_50 = arith.constant 0 : index
    %49 = vector.load %arg4[%c0_49, %c13, %c0_50] : memref<2x16x16xf32, #tpu.memory_space<vmem>>, vector<2x1x16xf32>
    %50 = vector.shape_cast %49 : vector<2x1x16xf32> to vector<2x16xf32>
    %c0_51 = arith.constant 0 : index
    %c208 = arith.constant 208 : index
    %51 = vector.load %arg3[%c0_51, %c208] : memref<2x256xf32, #tpu.memory_space<vmem>>, vector<2x16xf32>
    tpu.vector_store %arg3[%c0_51, %c208], %50 {strides = array<i32>} : memref<2x256xf32, #tpu.memory_space<vmem>>, vector<2x16xf32>,
    %c0_52 = arith.constant 0 : index
    %c14 = arith.constant 14 : index
    %c0_53 = arith.constant 0 : index
    %52 = vector.load %arg4[%c0_52, %c14, %c0_53] : memref<2x16x16xf32, #tpu.memory_space<vmem>>, vector<2x1x16xf32>
    %53 = vector.shape_cast %52 : vector<2x1x16xf32> to vector<2x16xf32>
    %c0_54 = arith.constant 0 : index
    %c224 = arith.constant 224 : index
    %54 = vector.load %arg3[%c0_54, %c224] : memref<2x256xf32, #tpu.memory_space<vmem>>, vector<2x16xf32>
    tpu.vector_store %arg3[%c0_54, %c224], %53 {strides = array<i32>} : memref<2x256xf32, #tpu.memory_space<vmem>>, vector<2x16xf32>,
    %c0_55 = arith.constant 0 : index
    %c15 = arith.constant 15 : index
    %c0_56 = arith.constant 0 : index
    %55 = vector.load %arg4[%c0_55, %c15, %c0_56] : memref<2x16x16xf32, #tpu.memory_space<vmem>>, vector<2x1x16xf32>
    %56 = vector.shape_cast %55 : vector<2x1x16xf32> to vector<2x16xf32>
    %c0_57 = arith.constant 0 : index
    %c240 = arith.constant 240 : index
    %57 = vector.load %arg3[%c0_57, %c240] : memref<2x256xf32, #tpu.memory_space<vmem>>, vector<2x16xf32>
    tpu.vector_store %arg3[%c0_57, %c240], %56 {strides = array<i32>} : memref<2x256xf32, #tpu.memory_space<vmem>>, vector<2x16xf32>,
    return
  }
  func.func @transform_0(%arg0: i32) -> (i32, i32) {
    %c0_i32 = arith.constant 0 : i32
    %c0_i32_0 = arith.constant 0 : i32
    return %arg0, %c0_i32 : i32, i32
  }
  func.func @transform_1(%arg0: i32) -> (i32, i32, i32) {
    %c0_i32 = arith.constant 0 : i32
    %c0_i32_0 = arith.constant 0 : i32
    %c0_i32_1 = arith.constant 0 : i32
    return %arg0, %c0_i32, %c0_i32_0 : i32, i32, i32
  }
  func.func @transform_2(%arg0: i32) -> (i32, i32) {
    %c0_i32 = arith.constant 0 : i32
    %c0_i32_0 = arith.constant 0 : i32
    return %arg0, %c0_i32 : i32, i32
  }
}

</mosaic_0001>

<llo_original>
// kernel: tpu_custom_call.1
$region0: #{tpu_custom_call.1}
  #allocation0 [shape = 'u32[]', space=smem, size = 0x4, offset = 0x4, fixed_abs, tag = 'smem constant byte address 0x4 - core index']
  #allocation1 [shape = 'u32[144,128]{1,0:T(1,128)}', space=vmem, size = 0x12000, scoped, tag = 'internal scratch']
  #allocation2 [shape = 'f32[2,16,16]{2,1,0:T(8,128)}', space=vmem, size = 0x4000, scoped, tag = 'scratch operand']
  %s0 = inlined_call_operand.hbm [shape: f32[2,16], index: 0, kind: input, shape index: {}]
  %s1 = inlined_call_operand.hbm [shape: f32[2,16,16], index: 1, kind: input, shape index: {}]
  %s2 = inlined_call_operand.hbm [shape: f32[2,256], index: 2, kind: output, shape index: {}]
  %s3 = sld [smem:[#allocation0]]
  $region26: #{tpu_custom_call.1} parent=0
    _
  %s5 = ssub.s32 1, %s3
  %s6 = scalar_select 0, %s5, %s3
  $region1: #{tpu_custom_call.1} parent=0
    #allocation3 [shape = 'u8[1024]{0}', space=vmem, size = 0x400, scoped, tag = 'input window, operand 0, single buffered']
    #allocation4 [shape = 's32[1]{0}', space=sflag, size = 0x4, scoped, tag = 'scoped memory for tpu_custom_call.1']
    #allocation5 [shape = 's32[1]{0}', space=sflag, size = 0x4, scoped, tag = 'scoped memory for tpu_custom_call.1']
    #allocation6 [shape = 'u8[16384]{0}', space=vmem, size = 0x4000, scoped, tag = 'input window, operand 1, single buffered']
    #allocation7 [shape = 's32[1]{0}', space=sflag, size = 0x4, scoped, tag = 'scoped memory for tpu_custom_call.1']
    #allocation8 [shape = 'u8[2048]{0}', space=vmem, size = 0x800, scoped, tag = 'output window, operand 0, single buffered']
    %7 = vsyncpa [#allocation4], 0
    %8 = vsyncpa [#allocation7], 0
    %9 = vsyncpa [#allocation5], 0
    // Predicated region
    $region2: #{tpu_custom_call.1} parent=1 // pred_check
      _
    $region3: #{tpu_custom_call.1} parent=1 // pred_check_branch
      %11 = sbr.rel (0) target = $region5
    $region4: #{tpu_custom_call.1} parent=1 // pred_region
      %s13 = ssub.s32 32, 32
      %14 = vsyncadd [#allocation4], %s13
      %s16 = sshll.u32 [#allocation3], 4
      %s17 = int_to_ptr.vmem [resolvable:$true] %s16
      %19 = dma.hbm_to_vmem [thread:$0]  %s0, 32, %s17, [#allocation4]
    $region5: #{tpu_custom_call.1} parent=1 // pred_fallthru
      _
    // Predicated region
    $region6: #{tpu_custom_call.1} parent=1 // pred_check
      _
    $region7: #{tpu_custom_call.1} parent=1 // pred_check_branch
      %21 = sbr.rel (0) target = $region9
    $region8: #{tpu_custom_call.1} parent=1 // pred_region
      %s23 = ssub.s32 512, 512
      %24 = vsyncadd [#allocation7], %s23
      %s25 = sshll.u32 [#allocation6], 4
      %s26 = int_to_ptr.vmem [resolvable:$true] %s25
      %31 = dma.hbm_to_vmem [thread:$0]  %s1, 512, %s26, [#allocation7], 128, 128, 8
    $region9: #{tpu_custom_call.1} parent=1 // pred_fallthru
      _
    // Predicated region
    $region10: #{tpu_custom_call.1} parent=1 // pred_check
      _
    $region11: #{tpu_custom_call.1} parent=1 // pred_check_branch
      %33 = sbr.rel (0) target = $region13
    $region12: #{tpu_custom_call.1} parent=1 // pred_region
      %34 = dma.done [#allocation4], 32
    $region13: #{tpu_custom_call.1} parent=1 // pred_fallthru
      _
    // Predicated region
    $region14: #{tpu_custom_call.1} parent=1 // pred_check
      _
    $region15: #{tpu_custom_call.1} parent=1 // pred_check_branch
      %36 = sbr.rel (0) target = $region17
    $region16: #{tpu_custom_call.1} parent=1 // pred_region
      %37 = dma.done [#allocation7], 512
    $region17: #{tpu_custom_call.1} parent=1 // pred_fallthru
      _
    %v38 = vld [vmem:[#allocation3] sm:$0x3]
    %v39 = vmax.f32 %v38, 1.1754944e-38
    %v40 = vlog2.pop %v39
    %v41 = vmul.f32 %v40, 0.6931472
    %v42 = vld [vmem:[#allocation6] sm:$0xff]
    %v43 = vld [vmem:[#allocation6 + $0x8] sm:$0xff]
    %v44 = vld [vmem:[#allocation6 + $0x10] sm:$0xff]
    %v45 = vld [vmem:[#allocation6 + $0x18] sm:$0xff]
    %v48 = vunpack.c.l.s4 1966171168
    %v49 = vunpack.c.0.s8 %v48
    %v50 = vlaneseq
    %v51 = vshrl.u32 %v50, 7
    %v52 = vsub.s32 %v49, %v51
    %v53 = vrot.slane %v41, %v52
    %v54 = vcombine.high %v53, %v53
    %v56 = vunpack.c.l.s4 1966171168
    %v57 = vunpack.c.0.s8 %v56
    %v58 = vlaneseq
    %v59 = vshrl.u32 %v58, 7
    %v60 = vsub.s32 %v57, %v59
    %v61 = vrot.slane %v53, %v60
    %v63 = vunpack.c.l.s4 1966171168
    %v64 = vunpack.c.0.s8 %v63
    %v65 = vlaneseq
    %v66 = vshrl.u32 %v65, 7
    %v67 = vsub.s32 %v64, %v66
    %v68 = vrot.slane %v54, %v67
    %v69 = vlaneseq
    %v70 = vshrl.u32 %v69, 7
    %v71 = vsub.s32 0, %v70
    %v72 = vrot.slane %v61, %v71
    %v73 = vlaneseq
    %v74 = vshrl.u32 %v73, 7
    %v75 = vsub.s32 0, %v74
    %v76 = vrot.slane %v68, %v75
    %v79 = vmul.f32 %v42, %v72
    %v80 = vmul.f32 %v43, %v72
    %v81 = vmul.f32 %v44, %v76
    %v82 = vmul.f32 %v45, %v76
    %vm83 = vcmask 130048
    %v85 = vsel %vm83, %v79, 0
    %v88 = vsel %vm83, %v80, 0
    %v91 = vsel %vm83, %v42, 0
    %v94 = vsel %vm83, %v43, 0
    %96 = vmatprep.subr.mxu0 0.0
    %97 = vmatpush1.xpose.msra.mxu0 %v91
    %98 = vmatprep.subr.mxu0 0.0
    %99 = vmatpush1.xpose.msra.mxu0 %v94
    %100 = vmatprep.subr.mxu0 0.0
    %101 = vmatpush1.xpose.msra.mxu0 0.0
    %102 = vmatprep.subr.mxu0 0.0
    %103 = vmatpush1.xpose.msra.mxu0 0.0
    %104 = vmatprep.subr.mxu0 0.0
    %105 = vmatpush1.xpose.msra.mxu0 0.0
    %106 = vmatprep.subr.mxu0 0.0
    %107 = vmatpush1.xpose.msra.mxu0 0.0
    %108 = vmatprep.subr.mxu0 0.0
    %109 = vmatpush1.xpose.msra.mxu0 0.0
    %110 = vmatprep.subr.mxu0 0.0
    %111 = vmatpush1.xpose.msra.mxu0 0.0
    %112 = vmatprep.subr.mxu0 0.0
    %113 = vmatpush1.xpose.msra.mxu0 0.0
    %114 = vmatprep.subr.mxu0 0.0
    %115 = vmatpush1.xpose.msra.mxu0 0.0
    %116 = vmatprep.subr.mxu0 0.0
    %117 = vmatpush1.xpose.msra.mxu0 0.0
    %118 = vmatprep.subr.mxu0 0.0
    %119 = vmatpush1.xpose.msra.mxu0 0.0
    %120 = vmatprep.subr.mxu0 0.0
    %121 = vmatpush1.xpose.msra.mxu0 0.0
    %122 = vmatprep.subr.mxu0 0.0
    %123 = vmatpush1.xpose.msra.mxu0 0.0
    %124 = vmatprep.subr.mxu0 0.0
    %125 = vmatpush1.xpose.msra.mxu0 0.0
    %126 = vmatprep.subr.mxu0 0.0
    %127 = vmatpush1.xpose.msra.mxu0 0.0
    %128 = vmatprep.subr.mxu0 0.0
    %129 = vmatpush1.xpose.msra.mxu0 0.0
    %130 = vmatprep.subr.mxu0 0.0
    %131 = vmatpush1.xpose.msra.mxu0 0.0
    %132 = vmatprep.subr.mxu0 0.0
    %133 = vmatpush1.xpose.msra.mxu0 0.0
    %134 = vmatprep.subr.mxu0 0.0
    %135 = vmatpush1.xpose.msra.mxu0 0.0
    %136 = vmatprep.subr.mxu0 0.0
    %137 = vmatpush1.xpose.msra.mxu0 0.0
    %138 = vmatprep.subr.mxu0 0.0
    %139 = vmatpush1.xpose.msra.mxu0 0.0
    %140 = vmatprep.subr.mxu0 0.0
    %141 = vmatpush1.xpose.msra.mxu0 0.0
    %142 = vmatprep.subr.mxu0 0.0
    %143 = vmatpush1.xpose.msra.mxu0 0.0
    %144 = vmatprep.subr.mxu0 0.0
    %145 = vmatpush1.xpose.msra.mxu0 0.0
    %146 = vmatprep.subr.mxu0 0.0
    %147 = vmatpush1.xpose.msra.mxu0 0.0
    %148 = vmatprep.subr.mxu0 0.0
    %149 = vmatpush1.xpose.msra.mxu0 0.0
    %150 = vmatprep.subr.mxu0 0.0
    %151 = vmatpush1.xpose.msra.mxu0 0.0
    %152 = vmatprep.subr.mxu0 0.0
    %153 = vmatpush1.xpose.msra.mxu0 0.0
    %154 = vmatprep.subr.mxu0 0.0
    %155 = vmatpush1.xpose.msra.mxu0 0.0
    %156 = vmatprep.subr.mxu0 0.0
    %157 = vmatpush1.xpose.msra.mxu0 0.0
    %158 = vmatprep.subr.mxu0 0.0
    %159 = vmatpush1.xpose.msra.mxu0 0.0
    %160 = vmatprep.mubr.f32.mxu0 0.0
    %161 = vmatmul.mubr.f32.gmra.mrb[0].mxu0 %v85
    %v162 = vpop.f32.mrb[0].mxu0
    %v163 = vadd.f32 0.0, %v162
    %v164 = vpop.f32.mrb[0].mxu0
    %165 = vmatprep.mubr.f32.mxu0 0.0
    %166 = vmatmul.mubr.f32.gmra.mrb[0].mxu0 %v88
    %v167 = vpop.f32.mrb[0].mxu0
    %v168 = vadd.f32 0.0, %v167
    %v169 = vpop.f32.mrb[0].mxu0
    %170 = vdwg.mxu0
    %v172 = vsel %vm83, %v81, 0
    %v175 = vsel %vm83, %v82, 0
    %v178 = vsel %vm83, %v44, 0
    %v181 = vsel %vm83, %v45, 0
    %183 = vmatprep.subr.mxu0 0.0
    %184 = vmatpush1.xpose.msra.mxu0 %v178
    %185 = vmatprep.subr.mxu0 0.0
    %186 = vmatpush1.xpose.msra.mxu0 %v181
    %187 = vmatprep.subr.mxu0 0.0
    %188 = vmatpush1.xpose.msra.mxu0 0.0
    %189 = vmatprep.subr.mxu0 0.0
    %190 = vmatpush1.xpose.msra.mxu0 0.0
    %191 = vmatprep.subr.mxu0 0.0
    %192 = vmatpush1.xpose.msra.mxu0 0.0
    %193 = vmatprep.subr.mxu0 0.0
    %194 = vmatpush1.xpose.msra.mxu0 0.0
    %195 = vmatprep.subr.mxu0 0.0
    %196 = vmatpush1.xpose.msra.mxu0 0.0
    %197 = vmatprep.subr.mxu0 0.0
    %198 = vmatpush1.xpose.msra.mxu0 0.0
    %199 = vmatprep.subr.mxu0 0.0
    %200 = vmatpush1.xpose.msra.mxu0 0.0
    %201 = vmatprep.subr.mxu0 0.0
    %202 = vmatpush1.xpose.msra.mxu0 0.0
    %203 = vmatprep.subr.mxu0 0.0
    %204 = vmatpush1.xpose.msra.mxu0 0.0
    %205 = vmatprep.subr.mxu0 0.0
    %206 = vmatpush1.xpose.msra.mxu0 0.0
    %207 = vmatprep.subr.mxu0 0.0
    %208 = vmatpush1.xpose.msra.mxu0 0.0
    %209 = vmatprep.subr.mxu0 0.0
    %210 = vmatpush1.xpose.msra.mxu0 0.0
    %211 = vmatprep.subr.mxu0 0.0
    %212 = vmatpush1.xpose.msra.mxu0 0.0
    %213 = vmatprep.subr.mxu0 0.0
    %214 = vmatpush1.xpose.msra.mxu0 0.0
    %215 = vmatprep.subr.mxu0 0.0
    %216 = vmatpush1.xpose.msra.mxu0 0.0
    %217 = vmatprep.subr.mxu0 0.0
    %218 = vmatpush1.xpose.msra.mxu0 0.0
    %219 = vmatprep.subr.mxu0 0.0
    %220 = vmatpush1.xpose.msra.mxu0 0.0
    %221 = vmatprep.subr.mxu0 0.0
    %222 = vmatpush1.xpose.msra.mxu0 0.0
    %223 = vmatprep.subr.mxu0 0.0
    %224 = vmatpush1.xpose.msra.mxu0 0.0
    %225 = vmatprep.subr.mxu0 0.0
    %226 = vmatpush1.xpose.msra.mxu0 0.0
    %227 = vmatprep.subr.mxu0 0.0
    %228 = vmatpush1.xpose.msra.mxu0 0.0
    %229 = vmatprep.subr.mxu0 0.0
    %230 = vmatpush1.xpose.msra.mxu0 0.0
    %231 = vmatprep.subr.mxu0 0.0
    %232 = vmatpush1.xpose.msra.mxu0 0.0
    %233 = vmatprep.subr.mxu0 0.0
    %234 = vmatpush1.xpose.msra.mxu0 0.0
    %235 = vmatprep.subr.mxu0 0.0
    %236 = vmatpush1.xpose.msra.mxu0 0.0
    %237 = vmatprep.subr.mxu0 0.0
    %238 = vmatpush1.xpose.msra.mxu0 0.0
    %239 = vmatprep.subr.mxu0 0.0
    %240 = vmatpush1.xpose.msra.mxu0 0.0
    %241 = vmatprep.subr.mxu0 0.0
    %242 = vmatpush1.xpose.msra.mxu0 0.0
    %243 = vmatprep.subr.mxu0 0.0
    %244 = vmatpush1.xpose.msra.mxu0 0.0
    %245 = vmatprep.subr.mxu0 0.0
    %246 = vmatpush1.xpose.msra.mxu0 0.0
    %247 = vmatprep.mubr.f32.mxu0 0.0
    %248 = vmatmul.mubr.f32.gmra.mrb[0].mxu0 %v172
    %v249 = vpop.f32.mrb[0].mxu0
    %v250 = vadd.f32 0.0, %v249
    %v251 = vpop.f32.mrb[0].mxu0
    %252 = vmatprep.mubr.f32.mxu0 0.0
    %253 = vmatmul.mubr.f32.gmra.mrb[0].mxu0 %v175
    %v254 = vpop.f32.mrb[0].mxu0
    %v255 = vadd.f32 0.0, %v254
    %v256 = vpop.f32.mrb[0].mxu0
    %257 = vdwg.mxu0
    %258 = vst.msk [vmem:[#allocation2] sm:$0xff] %vm83, %v163
    %259 = vst.msk [vmem:[#allocation2 + $0x8] sm:$0xff] %vm83, %v168
    %260 = vst.msk [vmem:[#allocation2 + $0x10] sm:$0xff] %vm83, %v250
    %261 = vst.msk [vmem:[#allocation2 + $0x18] sm:$0xff] %vm83, %v255
    %v262 = vld [vmem:[#allocation2] sm:$0x1]
    %v263 = vld [vmem:[#allocation2 + $0x10] sm:$0x1]
    %v267 = vunpack.c.l.s4 1983009808
    %v268 = vunpack.c.0.s8 %v267
    %v269 = vlaneseq
    %v270 = vshrl.u32 %v269, 7
    %v271 = vsub.s32 %v268, %v270
    %v272 = vrot.slane %v262, %v271
    %v274 = vunpack.c.l.s4 1983009808
    %v275 = vunpack.c.0.s8 %v274
    %v276 = vlaneseq
    %v277 = vshrl.u32 %v276, 7
    %v278 = vsub.s32 %v275, %v277
    %v279 = vrot.slane %v263, %v278
    %vm280 = vcmask 1044484
    %v281 = vsel %vm280, %v272, %v272
    %vm282 = vcmask 1046534
    %v283 = vsel %vm282, %v272, %v281
    %v284 = vrot.slane %v279, 7
    %vm285 = vcmask 1041409
    %v286 = vsel %vm285, %v284, %v283
    %vm287 = vcmask 1043459
    %v288 = vsel %vm287, %v284, %v286
    %vm289 = vcmask 1045509
    %v290 = vsel %vm289, %v284, %v288
    %vm291 = vcmask 1047559
    %v292 = vsel %vm291, %v284, %v290
    %vm294 = vcmask 123904
    %295 = vst.msk [vmem:[#allocation8] sm:$0x3] %vm294, %v292
    %v296 = vld [vmem:[#allocation2 + $0x1] sm:$0x1]
    %v297 = vld [vmem:[#allocation2 + $0x11] sm:$0x1]
    %v301 = vunpack.c.l.s4 1983009808
    %v302 = vunpack.c.0.s8 %v301
    %v303 = vlaneseq
    %v304 = vshrl.u32 %v303, 7
    %v305 = vsub.s32 %v302, %v304
    %v306 = vrot.slane %v296, %v305
    %v308 = vunpack.c.l.s4 1983009808
    %v309 = vunpack.c.0.s8 %v308
    %v310 = vlaneseq
    %v311 = vshrl.u32 %v310, 7
    %v312 = vsub.s32 %v309, %v311
    %v313 = vrot.slane %v297, %v312
    %v314 = vsel %vm280, %v306, %v306
    %v315 = vsel %vm282, %v306, %v314
    %v316 = vrot.slane %v313, 7
    %v317 = vsel %vm285, %v316, %v315
    %v318 = vsel %vm287, %v316, %v317
    %v319 = vsel %vm289, %v316, %v318
    %v320 = vsel %vm291, %v316, %v319
    %321 = vrot.lane.b32.xlu0 %v320, 16
    %v322 = vpop.permute.xlu0 %321
    %vm324 = vcmask 255104
    %325 = vst.msk [vmem:[#allocation8] sm:$0x3] %vm324, %v322
    %v326 = vld [vmem:[#allocation2 + $0x2] sm:$0x1]
    %v327 = vld [vmem:[#allocation2 + $0x12] sm:$0x1]
    %v331 = vunpack.c.l.s4 1983009808
    %v332 = vunpack.c.0.s8 %v331
    %v333 = vlaneseq
    %v334 = vshrl.u32 %v333, 7
    %v335 = vsub.s32 %v332, %v334
    %v336 = vrot.slane %v326, %v335
    %v338 = vunpack.c.l.s4 1983009808
    %v339 = vunpack.c.0.s8 %v338
    %v340 = vlaneseq
    %v341 = vshrl.u32 %v340, 7
    %v342 = vsub.s32 %v339, %v341
    %v343 = vrot.slane %v327, %v342
    %v344 = vsel %vm280, %v336, %v336
    %v345 = vsel %vm282, %v336, %v344
    %v346 = vrot.slane %v343, 7
    %v347 = vsel %vm285, %v346, %v345
    %v348 = vsel %vm287, %v346, %v347
    %v349 = vsel %vm289, %v346, %v348
    %v350 = vsel %vm291, %v346, %v349
    %351 = vrot.lane.b32.xlu0 %v350, 32
    %v352 = vpop.permute.xlu0 %351
    %vm354 = vcmask 386304
    %355 = vst.msk [vmem:[#allocation8] sm:$0x3] %vm354, %v352
    %v356 = vld [vmem:[#allocation2 + $0x3] sm:$0x1]
    %v357 = vld [vmem:[#allocation2 + $0x13] sm:$0x1]
    %v361 = vunpack.c.l.s4 1983009808
    %v362 = vunpack.c.0.s8 %v361
    %v363 = vlaneseq
    %v364 = vshrl.u32 %v363, 7
    %v365 = vsub.s32 %v362, %v364
    %v366 = vrot.slane %v356, %v365
    %v368 = vunpack.c.l.s4 1983009808
    %v369 = vunpack.c.0.s8 %v368
    %v370 = vlaneseq
    %v371 = vshrl.u32 %v370, 7
    %v372 = vsub.s32 %v369, %v371
    %v373 = vrot.slane %v357, %v372
    %v374 = vsel %vm280, %v366, %v366
    %v375 = vsel %vm282, %v366, %v374
    %v376 = vrot.slane %v373, 7
    %v377 = vsel %vm285, %v376, %v375
    %v378 = vsel %vm287, %v376, %v377
    %v379 = vsel %vm289, %v376, %v378
    %v380 = vsel %vm291, %v376, %v379
    %381 = vrot.lane.b32.xlu0 %v380, 48
    %v382 = vpop.permute.xlu0 %381
    %vm384 = vcmask 517504
    %385 = vst.msk [vmem:[#allocation8] sm:$0x3] %vm384, %v382
    %v386 = vld [vmem:[#allocation2 + $0x4] sm:$0x1]
    %v387 = vld [vmem:[#allocation2 + $0x14] sm:$0x1]
    %v391 = vunpack.c.l.s4 1983009808
    %v392 = vunpack.c.0.s8 %v391
    %v393 = vlaneseq
    %v394 = vshrl.u32 %v393, 7
    %v395 = vsub.s32 %v392, %v394
    %v396 = vrot.slane %v386, %v395
    %v398 = vunpack.c.l.s4 1983009808
    %v399 = vunpack.c.0.s8 %v398
    %v400 = vlaneseq
    %v401 = vshrl.u32 %v400, 7
    %v402 = vsub.s32 %v399, %v401
    %v403 = vrot.slane %v387, %v402
    %v404 = vsel %vm280, %v396, %v396
    %v405 = vsel %vm282, %v396, %v404
    %v406 = vrot.slane %v403, 7
    %v407 = vsel %vm285, %v406, %v405
    %v408 = vsel %vm287, %v406, %v407
    %v409 = vsel %vm289, %v406, %v408
    %v410 = vsel %vm291, %v406, %v409
    %411 = vrot.lane.b32.xlu0 %v410, 64
    %v412 = vpop.permute.xlu0 %411
    %vm414 = vcmask 648704
    %415 = vst.msk [vmem:[#allocation8] sm:$0x3] %vm414, %v412
    %v416 = vld [vmem:[#allocation2 + $0x5] sm:$0x1]
    %v417 = vld [vmem:[#allocation2 + $0x15] sm:$0x1]
    %v421 = vunpack.c.l.s4 1983009808
    %v422 = vunpack.c.0.s8 %v421
    %v423 = vlaneseq
    %v424 = vshrl.u32 %v423, 7
    %v425 = vsub.s32 %v422, %v424
    %v426 = vrot.slane %v416, %v425
    %v428 = vunpack.c.l.s4 1983009808
    %v429 = vunpack.c.0.s8 %v428
    %v430 = vlaneseq
    %v431 = vshrl.u32 %v430, 7
    %v432 = vsub.s32 %v429, %v431
    %v433 = vrot.slane %v417, %v432
    %v434 = vsel %vm280, %v426, %v426
    %v435 = vsel %vm282, %v426, %v434
    %v436 = vrot.slane %v433, 7
    %v437 = vsel %vm285, %v436, %v435
    %v438 = vsel %vm287, %v436, %v437
    %v439 = vsel %vm289, %v436, %v438
    %v440 = vsel %vm291, %v436, %v439
    %441 = vrot.lane.b32.xlu0 %v440, 80
    %v442 = vpop.permute.xlu0 %441
    %vm444 = vcmask 779904
    %445 = vst.msk [vmem:[#allocation8] sm:$0x3] %vm444, %v442
    %v446 = vld [vmem:[#allocation2 + $0x6] sm:$0x1]
    %v447 = vld [vmem:[#allocation2 + $0x16] sm:$0x1]
    %v451 = vunpack.c.l.s4 1983009808
    %v452 = vunpack.c.0.s8 %v451
    %v453 = vlaneseq
    %v454 = vshrl.u32 %v453, 7
    %v455 = vsub.s32 %v452, %v454
    %v456 = vrot.slane %v446, %v455
    %v458 = vunpack.c.l.s4 1983009808
    %v459 = vunpack.c.0.s8 %v458
    %v460 = vlaneseq
    %v461 = vshrl.u32 %v460, 7
    %v462 = vsub.s32 %v459, %v461
    %v463 = vrot.slane %v447, %v462
    %v464 = vsel %vm280, %v456, %v456
    %v465 = vsel %vm282, %v456, %v464
    %v466 = vrot.slane %v463, 7
    %v467 = vsel %vm285, %v466, %v465
    %v468 = vsel %vm287, %v466, %v467
    %v469 = vsel %vm289, %v466, %v468
    %v470 = vsel %vm291, %v466, %v469
    %471 = vrot.lane.b32.xlu0 %v470, 96
    %v472 = vpop.permute.xlu0 %471
    %vm474 = vcmask 911104
    %475 = vst.msk [vmem:[#allocation8] sm:$0x3] %vm474, %v472
    %v476 = vld [vmem:[#allocation2 + $0x7] sm:$0x1]
    %v477 = vld [vmem:[#allocation2 + $0x17] sm:$0x1]
    %v481 = vunpack.c.l.s4 1983009808
    %v482 = vunpack.c.0.s8 %v481
    %v483 = vlaneseq
    %v484 = vshrl.u32 %v483, 7
    %v485 = vsub.s32 %v482, %v484
    %v486 = vrot.slane %v476, %v485
    %v488 = vunpack.c.l.s4 1983009808
    %v489 = vunpack.c.0.s8 %v488
    %v490 = vlaneseq
    %v491 = vshrl.u32 %v490, 7
    %v492 = vsub.s32 %v489, %v491
    %v493 = vrot.slane %v477, %v492
    %v494 = vsel %vm280, %v486, %v486
    %v495 = vsel %vm282, %v486, %v494
    %v496 = vrot.slane %v493, 7
    %v497 = vsel %vm285, %v496, %v495
    %v498 = vsel %vm287, %v496, %v497
    %v499 = vsel %vm289, %v496, %v498
    %v500 = vsel %vm291, %v496, %v499
    %501 = vrot.lane.b32.xlu0 %v500, 112
    %v502 = vpop.permute.xlu0 %501
    %vm504 = vcmask 1042304
    %505 = vst.msk [vmem:[#allocation8] sm:$0x3] %vm504, %v502
    %v506 = vld [vmem:[#allocation2 + $0x8] sm:$0x1]
    %v507 = vld [vmem:[#allocation2 + $0x18] sm:$0x1]
    %v511 = vunpack.c.l.s4 1983009808
    %v512 = vunpack.c.0.s8 %v511
    %v513 = vlaneseq
    %v514 = vshrl.u32 %v513, 7
    %v515 = vsub.s32 %v512, %v514
    %v516 = vrot.slane %v506, %v515
    %v518 = vunpack.c.l.s4 1983009808
    %v519 = vunpack.c.0.s8 %v518
    %v520 = vlaneseq
    %v521 = vshrl.u32 %v520, 7
    %v522 = vsub.s32 %v519, %v521
    %v523 = vrot.slane %v507, %v522
    %v524 = vsel %vm280, %v516, %v516
    %v525 = vsel %vm282, %v516, %v524
    %v526 = vrot.slane %v523, 7
    %v527 = vsel %vm285, %v526, %v525
    %v528 = vsel %vm287, %v526, %v527
    %v529 = vsel %vm289, %v526, %v528
    %v530 = vsel %vm291, %v526, %v529
    %532 = vst.msk [vmem:[#allocation8 + $0x2] sm:$0x3] %vm294, %v530
    %v533 = vld [vmem:[#allocation2 + $0x9] sm:$0x1]
    %v534 = vld [vmem:[#allocation2 + $0x19] sm:$0x1]
    %v538 = vunpack.c.l.s4 1983009808
    %v539 = vunpack.c.0.s8 %v538
    %v540 = vlaneseq
    %v541 = vshrl.u32 %v540, 7
    %v542 = vsub.s32 %v539, %v541
    %v543 = vrot.slane %v533, %v542
    %v545 = vunpack.c.l.s4 1983009808
    %v546 = vunpack.c.0.s8 %v545
    %v547 = vlaneseq
    %v548 = vshrl.u32 %v547, 7
    %v549 = vsub.s32 %v546, %v548
    %v550 = vrot.slane %v534, %v549
    %v551 = vsel %vm280, %v543, %v543
    %v552 = vsel %vm282, %v543, %v551
    %v553 = vrot.slane %v550, 7
    %v554 = vsel %vm285, %v553, %v552
    %v555 = vsel %vm287, %v553, %v554
    %v556 = vsel %vm289, %v553, %v555
    %v557 = vsel %vm291, %v553, %v556
    %558 = vrot.lane.b32.xlu0 %v557, 16
    %v559 = vpop.permute.xlu0 %558
    %561 = vst.msk [vmem:[#allocation8 + $0x2] sm:$0x3] %vm324, %v559
    %v562 = vld [vmem:[#allocation2 + $0xa] sm:$0x1]
    %v563 = vld [vmem:[#allocation2 + $0x1a] sm:$0x1]
    %v567 = vunpack.c.l.s4 1983009808
    %v568 = vunpack.c.0.s8 %v567
    %v569 = vlaneseq
    %v570 = vshrl.u32 %v569, 7
    %v571 = vsub.s32 %v568, %v570
    %v572 = vrot.slane %v562, %v571
    %v574 = vunpack.c.l.s4 1983009808
    %v575 = vunpack.c.0.s8 %v574
    %v576 = vlaneseq
    %v577 = vshrl.u32 %v576, 7
    %v578 = vsub.s32 %v575, %v577
    %v579 = vrot.slane %v563, %v578
    %v580 = vsel %vm280, %v572, %v572
    %v581 = vsel %vm282, %v572, %v580
    %v582 = vrot.slane %v579, 7
    %v583 = vsel %vm285, %v582, %v581
    %v584 = vsel %vm287, %v582, %v583
    %v585 = vsel %vm289, %v582, %v584
    %v586 = vsel %vm291, %v582, %v585
    %587 = vrot.lane.b32.xlu0 %v586, 32
    %v588 = vpop.permute.xlu0 %587
    %590 = vst.msk [vmem:[#allocation8 + $0x2] sm:$0x3] %vm354, %v588
    %v591 = vld [vmem:[#allocation2 + $0xb] sm:$0x1]
    %v592 = vld [vmem:[#allocation2 + $0x1b] sm:$0x1]
    %v596 = vunpack.c.l.s4 1983009808
    %v597 = vunpack.c.0.s8 %v596
    %v598 = vlaneseq
    %v599 = vshrl.u32 %v598, 7
    %v600 = vsub.s32 %v597, %v599
    %v601 = vrot.slane %v591, %v600
    %v603 = vunpack.c.l.s4 1983009808
    %v604 = vunpack.c.0.s8 %v603
    %v605 = vlaneseq
    %v606 = vshrl.u32 %v605, 7
    %v607 = vsub.s32 %v604, %v606
    %v608 = vrot.slane %v592, %v607
    %v609 = vsel %vm280, %v601, %v601
    %v610 = vsel %vm282, %v601, %v609
    %v611 = vrot.slane %v608, 7
    %v612 = vsel %vm285, %v611, %v610
    %v613 = vsel %vm287, %v611, %v612
    %v614 = vsel %vm289, %v611, %v613
    %v615 = vsel %vm291, %v611, %v614
    %616 = vrot.lane.b32.xlu0 %v615, 48
    %v617 = vpop.permute.xlu0 %616
    %619 = vst.msk [vmem:[#allocation8 + $0x2] sm:$0x3] %vm384, %v617
    %v620 = vld [vmem:[#allocation2 + $0xc] sm:$0x1]
    %v621 = vld [vmem:[#allocation2 + $0x1c] sm:$0x1]
    %v625 = vunpack.c.l.s4 1983009808
    %v626 = vunpack.c.0.s8 %v625
    %v627 = vlaneseq
    %v628 = vshrl.u32 %v627, 7
    %v629 = vsub.s32 %v626, %v628
    %v630 = vrot.slane %v620, %v629
    %v632 = vunpack.c.l.s4 1983009808
    %v633 = vunpack.c.0.s8 %v632
    %v634 = vlaneseq
    %v635 = vshrl.u32 %v634, 7
    %v636 = vsub.s32 %v633, %v635
    %v637 = vrot.slane %v621, %v636
    %v638 = vsel %vm280, %v630, %v630
    %v639 = vsel %vm282, %v630, %v638
    %v640 = vrot.slane %v637, 7
    %v641 = vsel %vm285, %v640, %v639
    %v642 = vsel %vm287, %v640, %v641
    %v643 = vsel %vm289, %v640, %v642
    %v644 = vsel %vm291, %v640, %v643
    %645 = vrot.lane.b32.xlu0 %v644, 64
    %v646 = vpop.permute.xlu0 %645
    %648 = vst.msk [vmem:[#allocation8 + $0x2] sm:$0x3] %vm414, %v646
    %v649 = vld [vmem:[#allocation2 + $0xd] sm:$0x1]
    %v650 = vld [vmem:[#allocation2 + $0x1d] sm:$0x1]
    %v654 = vunpack.c.l.s4 1983009808
    %v655 = vunpack.c.0.s8 %v654
    %v656 = vlaneseq
    %v657 = vshrl.u32 %v656, 7
    %v658 = vsub.s32 %v655, %v657
    %v659 = vrot.slane %v649, %v658
    %v661 = vunpack.c.l.s4 1983009808
    %v662 = vunpack.c.0.s8 %v661
    %v663 = vlaneseq
    %v664 = vshrl.u32 %v663, 7
    %v665 = vsub.s32 %v662, %v664
    %v666 = vrot.slane %v650, %v665
    %v667 = vsel %vm280, %v659, %v659
    %v668 = vsel %vm282, %v659, %v667
    %v669 = vrot.slane %v666, 7
    %v670 = vsel %vm285, %v669, %v668
    %v671 = vsel %vm287, %v669, %v670
    %v672 = vsel %vm289, %v669, %v671
    %v673 = vsel %vm291, %v669, %v672
    %674 = vrot.lane.b32.xlu0 %v673, 80
    %v675 = vpop.permute.xlu0 %674
    %677 = vst.msk [vmem:[#allocation8 + $0x2] sm:$0x3] %vm444, %v675
    %v678 = vld [vmem:[#allocation2 + $0xe] sm:$0x1]
    %v679 = vld [vmem:[#allocation2 + $0x1e] sm:$0x1]
    %v683 = vunpack.c.l.s4 1983009808
    %v684 = vunpack.c.0.s8 %v683
    %v685 = vlaneseq
    %v686 = vshrl.u32 %v685, 7
    %v687 = vsub.s32 %v684, %v686
    %v688 = vrot.slane %v678, %v687
    %v690 = vunpack.c.l.s4 1983009808
    %v691 = vunpack.c.0.s8 %v690
    %v692 = vlaneseq
    %v693 = vshrl.u32 %v692, 7
    %v694 = vsub.s32 %v691, %v693
    %v695 = vrot.slane %v679, %v694
    %v696 = vsel %vm280, %v688, %v688
    %v697 = vsel %vm282, %v688, %v696
    %v698 = vrot.slane %v695, 7
    %v699 = vsel %vm285, %v698, %v697
    %v700 = vsel %vm287, %v698, %v699
    %v701 = vsel %vm289, %v698, %v700
    %v702 = vsel %vm291, %v698, %v701
    %703 = vrot.lane.b32.xlu0 %v702, 96
    %v704 = vpop.permute.xlu0 %703
    %706 = vst.msk [vmem:[#allocation8 + $0x2] sm:$0x3] %vm474, %v704
    %v707 = vld [vmem:[#allocation2 + $0xf] sm:$0x1]
    %v708 = vld [vmem:[#allocation2 + $0x1f] sm:$0x1]
    %v712 = vunpack.c.l.s4 1983009808
    %v713 = vunpack.c.0.s8 %v712
    %v714 = vlaneseq
    %v715 = vshrl.u32 %v714, 7
    %v716 = vsub.s32 %v713, %v715
    %v717 = vrot.slane %v707, %v716
    %v719 = vunpack.c.l.s4 1983009808
    %v720 = vunpack.c.0.s8 %v719
    %v721 = vlaneseq
    %v722 = vshrl.u32 %v721, 7
    %v723 = vsub.s32 %v720, %v722
    %v724 = vrot.slane %v708, %v723
    %v725 = vsel %vm280, %v717, %v717
    %v726 = vsel %vm282, %v717, %v725
    %v727 = vrot.slane %v724, 7
    %v728 = vsel %vm285, %v727, %v726
    %v729 = vsel %vm287, %v727, %v728
    %v730 = vsel %vm289, %v727, %v729
    %v731 = vsel %vm291, %v727, %v730
    %732 = vrot.lane.b32.xlu0 %v731, 112
    %v733 = vpop.permute.xlu0 %732
    %735 = vst.msk [vmem:[#allocation8 + $0x2] sm:$0x3] %vm504, %v733
    // Predicated region
    $region18: #{tpu_custom_call.1} parent=1 // pred_check
      _
    $region19: #{tpu_custom_call.1} parent=1 // pred_check_branch
      %737 = sbr.rel (0) target = $region21
    $region20: #{tpu_custom_call.1} parent=1 // pred_region
      %s739 = ssub.s32 64, 64
      %740 = vsyncadd [#allocation5], %s739
      %s742 = sshll.u32 [#allocation8], 4
      %s743 = int_to_ptr.vmem [resolvable:$true] %s742
      %745 = dma.vmem_to_hbm [thread:$0]  %s743, 64, %s2, [#allocation5]
    $region21: #{tpu_custom_call.1} parent=1 // pred_fallthru
      _
    // Predicated region
    $region22: #{tpu_custom_call.1} parent=1 // pred_check
      _
    $region23: #{tpu_custom_call.1} parent=1 // pred_check_branch
      %747 = sbr.rel (0) target = $region25
    $region24: #{tpu_custom_call.1} parent=1 // pred_region
      %748 = dma.done [#allocation5], 64
    $region25: #{tpu_custom_call.1} parent=1 // pred_fallthru
      _
    %749 = vsyncpa [#allocation4], 1
    %750 = vsyncpa [#allocation7], 1
    %751 = vsyncpa [#allocation5], 1

</llo_original>
